<compile_context>
chip_gen: v7x
topology: tpu7x:2x2x1
jax: 0.10.0
libtpu: 0.0.40
codegen_flags: <defaults>
</compile_context>

<pallas_src>
import functools

import jax
import jax.numpy as jnp
from jax.experimental import pallas as pl
from jax.experimental.pallas import tpu as pltpu

_LANE = 128
_NEG_PAD = -1.0e30  # pad value for logits: exp() underflows to exactly 0.0


def _round_up(x, m):
    return (x + m - 1) // m * m


def _pick_tile(b, c_pad, logit_bytes):
    """Byte-adaptive batch tile.

    Three (TB, C_pad) streams are double-buffered by the BlockSpec pipeline,
    so pipeline VMEM ~= 2 * TB * C_pad * (logit_bytes + 4 + 4).  Target ~16 MiB
    (blocks of ~2-4 MiB each) -> good HBM-roofline utilization on v5e/v6e while
    staying well under v7x's 64 MiB physical VMEM.
    """
    budget = 16 * 1024 * 1024
    per_row = 2 * c_pad * (logit_bytes + 4 + 4)
    tb = max(8, (budget // per_row) // 8 * 8)
    return int(min(tb, 1024, _round_up(b, 8)))


def _elr_kernel(logits_ref, tgt_ref, label_ref, new_tgt_ref, loss_ref, *,
                beta, lam, num_classes, class_padded):
    logits = logits_ref[...].astype(jnp.float32)      # (TB, C_pad)
    tgt_rows = tgt_ref[...].astype(jnp.float32)       # (TB, C_pad)
    labels = label_ref[...]                           # (TB, 1) int32

    tb, c_pad = logits.shape
    cls = jax.lax.broadcasted_iota(jnp.int32, (tb, c_pad), 1)

    # Row-wise numerically-stable softmax over the padded class axis.  Padded
    # lanes hold -1e30, so exp underflows to 0 and they drop out of the sums.
    m = jnp.max(logits, axis=1, keepdims=True)
    z = logits - m
    ez = jnp.exp(z)
    sez = jnp.sum(ez, axis=1, keepdims=True)
    inv_sez = pl.reciprocal(sez, approx=False)        # exact: feeds the EMA state
    y_pred = jnp.clip(ez * inv_sez, 1e-4, 1.0 - 1e-4)
    if class_padded:
        # The clamp's 1e-4 floor would resurrect padded lanes; zero them so
        # normalization / inner products match the unpadded reference exactly.
        y_pred = jnp.where(cls < num_classes, y_pred, 0.0)

    # EMA update of the persistent per-example targets (detached branch in torch).
    inv_ysum = pl.reciprocal(jnp.sum(y_pred, axis=1, keepdims=True), approx=False)
    new_tgt = beta * tgt_rows + (1.0 - beta) * (y_pred * inv_ysum)
    new_tgt_ref[...] = new_tgt.astype(new_tgt_ref.dtype)

    # Cross entropy rows without materializing a (TB, C_pad) log_softmax tile:
    #   -log_softmax[label] = log(sum(exp(z))) - z[label]
    z_label = jnp.sum(jnp.where(cls == labels, z, 0.0), axis=1, keepdims=True)
    ce_rows = jnp.log(sez) - z_label

    # ELR regularizer rows: log(1 - <new_target, y_pred>)
    inner = jnp.sum(new_tgt * y_pred, axis=1, keepdims=True)
    elr_rows = jnp.log(1.0 - inner)

    # Per-row loss partials; the wrapper slices off batch-pad rows and takes
    # the mean.  No cross-step accumulator -> the batch grid axis is truly
    # "parallel" (v7x 2-TC sharding; no-op on single-TC v5e/v6e).
    loss_ref[...] = ce_rows + lam * elr_rows


def init_elr_target(num_examp, num_classes, dtype=jnp.float32):
    """Persistent EMA state (torch: self.target), lane-padded once at init."""
    return jnp.zeros((num_examp, _round_up(num_classes, _LANE)), dtype)


def _elr_forward(index, output, label, target, *, lamda_elr, beta):
    """Functional elr_loss.forward: returns (final_loss, updated_target).

    `target` is the persistent per-example EMA state stored with its class
    axis padded to a multiple of 128 (one-time layout cost at init).
    """
    b, c = output.shape
    _, c_pad = target.shape
    assert c_pad == _round_up(c, _LANE), "target state must be lane-padded"

    logit_bytes = jnp.dtype(output.dtype).itemsize
    tb = _pick_tile(b, c_pad, logit_bytes)
    b_pad = _round_up(b, tb)
    grid = (b_pad // tb,)

    # Lane-pad logits (padded classes / rows -> -1e30) so every block is dense.
    logits = jnp.pad(output, ((0, b_pad - b), (0, c_pad - c)),
                     constant_values=_NEG_PAD)
    # TODO(synk): for large C move this gather (and the scatter below) into the
    # kernel via scalar-prefetched `index`, memory_space=pl.ANY target aliased
    # with input_output_aliases and per-row make_async_copy, cutting ~3x of
    # target-stream HBM traffic; the XLA gather/scatter path is kept for small C.
    tgt_rows = jnp.pad(target[index], ((0, b_pad - b), (0, 0)))
    labels = jnp.pad(label.astype(jnp.int32), (0, b_pad - b)).reshape(b_pad, 1)

    kernel = functools.partial(
        _elr_kernel, beta=float(beta), lam=float(lamda_elr),
        num_classes=c, class_padded=(c_pad != c))

    # 3 wide streams double-buffered + tiny label / row-loss blocks.
    pipeline_bytes = 2 * tb * (c_pad * (logit_bytes + 4 + 4) + 1024)
    vmem_limit = int(min(max(2 * pipeline_bytes, 16 * 2 ** 20), 64 * 2 ** 20))

    grid_spec = pltpu.PrefetchScalarGridSpec(
        num_scalar_prefetch=0,
        grid=grid,
        in_specs=[
            pl.BlockSpec((tb, c_pad), lambda i: (i, 0)),   # logits (native dtype)
            pl.BlockSpec((tb, c_pad), lambda i: (i, 0)),   # gathered target rows
            # Per-step (tb, 1) label block: tb*4 HBM bytes/step, fully hidden
            # under the wide streams (a resident (B,1) VMEM block would
            # lane-pad to B*512 bytes for no measurable gain).
            pl.BlockSpec((tb, 1), lambda i: (i, 0)),
        ],
        out_specs=[
            pl.BlockSpec((tb, c_pad), lambda i: (i, 0)),   # new target rows
            pl.BlockSpec((tb, 1), lambda i: (i, 0)),       # per-row loss partials
        ],
    )

    new_rows, row_loss = pl.pallas_call(
        kernel,
        grid_spec=grid_spec,
        out_shape=(
            jax.ShapeDtypeStruct((b_pad, c_pad), jnp.float32),
            jax.ShapeDtypeStruct((b_pad, 1), jnp.float32),
        ),
        compiler_params=pltpu.CompilerParams(
            dimension_semantics=("parallel",),
            vmem_limit_bytes=vmem_limit),
    )(logits, tgt_rows, labels)

    loss = jnp.sum(row_loss[:b]) / b
    # `target` is donated into the jit, so this row scatter is performed in
    # place: only the B touched rows move through HBM, no full-buffer copy.
    new_target = target.at[index].set(new_rows[:b])
    return loss, new_target


# Donation of the persistent state buffer is what makes the scatter in-place;
# beta / lamda_elr are static so they fold into vector constants in the kernel.
elr_loss_forward = jax.jit(_elr_forward,
                           static_argnames=("lamda_elr", "beta"),
                           donate_argnames=("target",))


def _reference(index, output, label, lamda_elr, target, beta):
    """Pure-JAX re-implementation of elr_loss.forward for validation."""
    y_pred = jax.nn.softmax(output, axis=1)
    y_pred = jnp.clip(y_pred, 1e-4, 1.0 - 1e-4)
    y_norm = y_pred / jnp.sum(y_pred, axis=1, keepdims=True)
    new_rows = beta * target[index] + (1.0 - beta) * y_norm
    new_target = target.at[index].set(new_rows)
    log_sm = jax.nn.log_softmax(output, axis=1)
    ce = -jnp.mean(jnp.take_along_axis(log_sm, label[:, None], axis=1))
    elr_reg = jnp.mean(jnp.log(1.0 - jnp.sum(new_rows * y_pred, axis=1)))
    return ce + lamda_elr * elr_reg, new_target


if __name__ == "__main__":
    num_examp = 32
    num_classes = 10
    batch = 8
    beta = 0.7
    lamda_elr = 3.0

    key = jax.random.PRNGKey(0)
    k1, k2, k3, k4 = jax.random.split(key, 4)

    output = jax.random.normal(k1, (batch, num_classes), dtype=jnp.float32)
    label = jax.random.randint(k2, (batch,), 0, num_classes, dtype=jnp.int32)
    # permutation => no duplicate indices within the batch (scatter is
    # order-unspecified for duplicates, same as the torch module)
    index = jax.random.permutation(k3, num_examp)[:batch].astype(jnp.int32)
    # non-trivial persistent state so the EMA / regularizer paths are exercised
    target_base = 0.05 * jax.random.uniform(
        k4, (num_examp, num_classes), dtype=jnp.float32)

    # Reference FIRST (the kernel path donates its padded state buffer).
    ref_loss, ref_target = _reference(index, output, label, lamda_elr,
                                      target_base, beta)
    ref_loss, ref_target = jax.block_until_ready((ref_loss, ref_target))

    # Persistent state lives lane-padded (class axis -> multiple of 128).
    target = init_elr_target(num_examp, num_classes)
    target = target.at[:, :num_classes].set(target_base)

    loss, new_target = elr_loss_forward(index, output, label, target,
                                        lamda_elr=lamda_elr, beta=beta)
    loss, new_target = jax.block_until_ready((loss, new_target))

    assert jnp.allclose(loss, ref_loss, atol=1e-5, rtol=1e-5), (loss, ref_loss)
    assert jnp.allclose(new_target[:, :num_classes], ref_target,
                        atol=2e-6, rtol=2e-6)
    assert bool(jnp.all(new_target[:, num_classes:] == 0.0))

    print("KERNEL_OK")
</pallas_src>

<mosaic_0001>
module attributes {stable_mosaic.version = 11 : i64} {
  func.func @_elr_kernel(%arg0: i32, %arg1: memref<8x128xf32, #tpu.memory_space<vmem>>, %arg2: memref<8x128xf32, #tpu.memory_space<vmem>>, %arg3: memref<8x1xi32, #tpu.memory_space<vmem>>, %arg4: memref<8x128xf32, #tpu.memory_space<vmem>>, %arg5: memref<8x1xf32, #tpu.memory_space<vmem>>) attributes {dimension_semantics = [#tpu.dimension_semantics<parallel>], iteration_bounds = array<i64: 1>, scalar_prefetch = 0 : i64, scratch_operands = 0 : i64, tpu.core_type = #tpu.core_type<tc>, window_params = [{transform_indices = @transform_0, window_bounds = array<i64: 8, 128>}, {transform_indices = @transform_1, window_bounds = array<i64: 8, 128>}, {transform_indices = @transform_2, window_bounds = array<i64: 8, 1>}, {transform_indices = @transform_3, window_bounds = array<i64: 8, 128>}, {transform_indices = @transform_4, window_bounds = array<i64: 8, 1>}]} {
    %c0 = arith.constant 0 : index
    %c0_0 = arith.constant 0 : index
    %0 = vector.load %arg1[%c0, %c0_0] : memref<8x128xf32, #tpu.memory_space<vmem>>, vector<8x128xf32>
    %c0_1 = arith.constant 0 : index
    %c0_2 = arith.constant 0 : index
    %1 = vector.load %arg2[%c0_1, %c0_2] : memref<8x128xf32, #tpu.memory_space<vmem>>, vector<8x128xf32>
    %c0_3 = arith.constant 0 : index
    %c0_4 = arith.constant 0 : index
    %2 = vector.load %arg3[%c0_3, %c0_4] : memref<8x1xi32, #tpu.memory_space<vmem>>, vector<8x1xi32>
    %3 = tpu.iota {dimensions = array<i32: 1>} : vector<8x128xi32>
    %cst = arith.constant dense<0xFF800000> : vector<8xf32>
    %4 = vector.multi_reduction <maximumf>, %0, %cst [1] : vector<8x128xf32> to vector<8xf32>
    %5 = vector.shape_cast %4 : vector<8xf32> to vector<8x1xf32>
    %6 = vector.broadcast %5 : vector<8x1xf32> to vector<8x128xf32>
    %7 = arith.subf %0, %6 : vector<8x128xf32>
    %8 = math.exp %7 : vector<8x128xf32>
    %cst_5 = arith.constant dense<0.000000e+00> : vector<8xf32>
    %9 = vector.multi_reduction <add>, %8, %cst_5 [1] : vector<8x128xf32> to vector<8xf32>
    %10 = vector.shape_cast %9 : vector<8xf32> to vector<8x1xf32>
    %11 = tpu.reciprocal %10 : vector<8x1xf32> -> vector<8x1xf32>
    %12 = vector.broadcast %11 : vector<8x1xf32> to vector<8x128xf32>
    %13 = arith.mulf %8, %12 : vector<8x128xf32>
    %cst_6 = arith.constant 9.99999974E-5 : f32
    %cst_7 = arith.constant 0.999899983 : f32
    %14 = vector.broadcast %cst_6 : f32 to vector<8x128xf32>
    %15 = arith.maximumf %14, %13 : vector<8x128xf32>
    %16 = vector.broadcast %cst_7 : f32 to vector<8x128xf32>
    %17 = arith.minimumf %16, %15 : vector<8x128xf32>
    %c10_i32 = arith.constant 10 : i32
    %18 = vector.broadcast %c10_i32 : i32 to vector<8x128xi32>
    %19 = arith.cmpi slt, %3, %18 : vector<8x128xi32>
    %cst_8 = arith.constant 0.000000e+00 : f32
    %20 = vector.broadcast %cst_8 : f32 to vector<8x128xf32>
    %21 = arith.select %19, %17, %20 : vector<8x128xi1>, vector<8x128xf32>
    %cst_9 = arith.constant dense<0.000000e+00> : vector<8xf32>
    %22 = vector.multi_reduction <add>, %21, %cst_9 [1] : vector<8x128xf32> to vector<8xf32>
    %23 = vector.shape_cast %22 : vector<8xf32> to vector<8x1xf32>
    %24 = tpu.reciprocal %23 : vector<8x1xf32> -> vector<8x1xf32>
    %cst_10 = arith.constant 0.699999988 : f32
    %25 = vector.broadcast %cst_10 : f32 to vector<8x128xf32>
    %26 = arith.mulf %25, %1 : vector<8x128xf32>
    %27 = vector.broadcast %24 : vector<8x1xf32> to vector<8x128xf32>
    %28 = arith.mulf %21, %27 : vector<8x128xf32>
    %cst_11 = arith.constant 3.000000e-01 : f32
    %29 = vector.broadcast %cst_11 : f32 to vector<8x128xf32>
    %30 = arith.mulf %29, %28 : vector<8x128xf32>
    %31 = arith.addf %26, %30 : vector<8x128xf32>
    %c0_12 = arith.constant 0 : index
    %c0_13 = arith.constant 0 : index
    %32 = vector.load %arg4[%c0_12, %c0_13] : memref<8x128xf32, #tpu.memory_space<vmem>>, vector<8x128xf32>
    tpu.vector_store %arg4[%c0_12, %c0_13], %31 {strides = array<i32>} : memref<8x128xf32, #tpu.memory_space<vmem>>, vector<8x128xf32>,
    %33 = vector.broadcast %2 : vector<8x1xi32> to vector<8x128xi32>
    %34 = arith.cmpi eq, %3, %33 : vector<8x128xi32>
    %cst_14 = arith.constant 0.000000e+00 : f32
    %35 = vector.broadcast %cst_14 : f32 to vector<8x128xf32>
    %36 = arith.select %34, %7, %35 : vector<8x128xi1>, vector<8x128xf32>
    %cst_15 = arith.constant dense<0.000000e+00> : vector<8xf32>
    %37 = vector.multi_reduction <add>, %36, %cst_15 [1] : vector<8x128xf32> to vector<8xf32>
    %38 = vector.shape_cast %37 : vector<8xf32> to vector<8x1xf32>
    %39 = math.log %10 : vector<8x1xf32>
    %40 = arith.subf %39, %38 : vector<8x1xf32>
    %41 = arith.mulf %31, %21 : vector<8x128xf32>
    %cst_16 = arith.constant dense<0.000000e+00> : vector<8xf32>
    %42 = vector.multi_reduction <add>, %41, %cst_16 [1] : vector<8x128xf32> to vector<8xf32>
    %43 = vector.shape_cast %42 : vector<8xf32> to vector<8x1xf32>
    %cst_17 = arith.constant 1.000000e+00 : f32
    %44 = vector.broadcast %cst_17 : f32 to vector<8x1xf32>
    %45 = arith.subf %44, %43 : vector<8x1xf32>
    %46 = math.log %45 : vector<8x1xf32>
    %cst_18 = arith.constant 3.000000e+00 : f32
    %47 = vector.broadcast %cst_18 : f32 to vector<8x1xf32>
    %48 = arith.mulf %47, %46 : vector<8x1xf32>
    %49 = arith.addf %40, %48 : vector<8x1xf32>
    %c0_19 = arith.constant 0 : index
    %c0_20 = arith.constant 0 : index
    %50 = vector.load %arg5[%c0_19, %c0_20] : memref<8x1xf32, #tpu.memory_space<vmem>>, vector<8x1xf32>
    tpu.vector_store %arg5[%c0_19, %c0_20], %49 {strides = array<i32>} : memref<8x1xf32, #tpu.memory_space<vmem>>, vector<8x1xf32>,
    return
  }
  func.func @transform_0(%arg0: i32) -> (i32, i32) {
    %c0_i32 = arith.constant 0 : i32
    %c0_i32_0 = arith.constant 0 : i32
    return %arg0, %c0_i32 : i32, i32
  }
  func.func @transform_1(%arg0: i32) -> (i32, i32) {
    %c0_i32 = arith.constant 0 : i32
    %c0_i32_0 = arith.constant 0 : i32
    return %arg0, %c0_i32 : i32, i32
  }
  func.func @transform_2(%arg0: i32) -> (i32, i32) {
    %c0_i32 = arith.constant 0 : i32
    %c0_i32_0 = arith.constant 0 : i32
    return %arg0, %c0_i32 : i32, i32
  }
  func.func @transform_3(%arg0: i32) -> (i32, i32) {
    %c0_i32 = arith.constant 0 : i32
    %c0_i32_0 = arith.constant 0 : i32
    return %arg0, %c0_i32 : i32, i32
  }
  func.func @transform_4(%arg0: i32) -> (i32, i32) {
    %c0_i32 = arith.constant 0 : i32
    %c0_i32_0 = arith.constant 0 : i32
    return %arg0, %c0_i32 : i32, i32
  }
}

</mosaic_0001>

<llo_original>
// kernel: _elr_forward.1
$region0: #{_elr_forward.1}
  #allocation0 [shape = 'u32[]', space=smem, size = 0x4, offset = 0x4, fixed_abs, tag = 'smem constant byte address 0x4 - core index']
  #allocation1 [shape = 'u32[144,128]{1,0:T(1,128)}', space=vmem, size = 0x12000, scoped, tag = 'internal scratch']
  %s0 = inlined_call_operand.vmem [shape: f32[8,128], index: 0, kind: input, shape index: {}]
  %s1 = inlined_call_operand.vmem [shape: f32[8,128], index: 1, kind: input, shape index: {}]
  %s2 = inlined_call_operand.vmem [shape: s32[8,1], index: 2, kind: input, shape index: {}]
  %s3 = inlined_call_operand.vmem [shape: f32[8,128], index: 3, kind: output, shape index: {0}]
  %s4 = inlined_call_operand.vmem [shape: f32[8,1], index: 4, kind: output, shape index: {1}]
  %5 = xla_tuple %s3, %s4
  %s6 = sld [smem:[#allocation0]]
  $region30: #{_elr_forward.1} parent=0
    _
  %s8 = ssub.s32 1, %s6
  %s9 = scalar_select 0, %s8, %s6
  // Predicated region
  $region2: #{_elr_forward.1} parent=0 // pred_check
    _
  $region3: #{_elr_forward.1} parent=0 // pred_check_branch
    %11 = sbr.rel (0) target = $region5
  $region4: #{_elr_forward.1} parent=0 // pred_region
    _
  $region5: #{_elr_forward.1} parent=0 // pred_fallthru
    _
  // Predicated region
  $region6: #{_elr_forward.1} parent=0 // pred_check
    _
  $region7: #{_elr_forward.1} parent=0 // pred_check_branch
    %13 = sbr.rel (0) target = $region9
  $region8: #{_elr_forward.1} parent=0 // pred_region
    _
  $region9: #{_elr_forward.1} parent=0 // pred_fallthru
    _
  // Predicated region
  $region10: #{_elr_forward.1} parent=0 // pred_check
    _
  $region11: #{_elr_forward.1} parent=0 // pred_check_branch
    %15 = sbr.rel (0) target = $region13
  $region12: #{_elr_forward.1} parent=0 // pred_region
    _
  $region13: #{_elr_forward.1} parent=0 // pred_fallthru
    _
  %v16 = vld [vmem:[%s0] sm:$0xff]
  %v17 = vld [vmem:[%s1] sm:$0xff]
  %v18 = vld [vmem:[%s2] sm:$0xff]
  %v19 = vlaneseq
  %v20 = vand.u32 %v19, 127
  %21 = vmax.xlane.f32.xlu0 %v16
  %v22 = vpop.xlane.xlu0 %21
  %v23 = vsub.f32 %v16, %v22
  %v24 = vmul.f32 %v23, 1.442695
  %v25 = vpow.pop %v24
  %26 = vadd.xlane.f32.xlu0 %v25
  %v27 = vpop.xlane.xlu0 %26
  %v28 = vrcp.pop %v27
  %v29 = vmul.f32 %v25, %v28
  %v30 = vmax.f32 %v29, 0.0001
  %v31 = vmin.f32 %v30, 0.9999
  %vm32 = vcmp.lt.s32.totalorder %v20, 10
  %v33 = vsel %vm32, %v31, 0.0
  %34 = vadd.xlane.f32.xlu0 %v33
  %v35 = vpop.xlane.xlu0 %34
  %v36 = vrcp.pop %v35
  %v37 = vmul.f32 %v17, 0.7
  %v38 = vmul.f32 %v33, %v36
  %v39 = vmul.f32 %v38, 0.3
  %v40 = vadd.f32 %v37, %v39
  %41 = vst [vmem:[%s3] sm:$0xff] %v40
  %42 = vset.pattern.permute.xlu0 0
  %43 = vperm.xlu0 %42, %v18
  %v44 = vpop.permute.xlu0 %43
  %vm45 = vcmp.eq.s32.totalorder %v20, %v44
  %v46 = vsel %vm45, %v23, 0.0
  %47 = vadd.xlane.f32.xlu0 %v46
  %v48 = vpop.xlane.xlu0 %47
  %v49 = vlog2.pop %v27
  %v50 = vmul.f32 %v49, 0.6931472
  %v51 = vsub.f32 %v50, %v48
  %v52 = vmul.f32 %v40, %v33
  %53 = vadd.xlane.f32.xlu0 %v52
  %v54 = vpop.xlane.xlu0 %53
  %v55 = vsub.f32 1.0, %v54
  %v56 = vlog2.pop %v55
  %v57 = vmul.f32 %v56, 0.6931472
  %v58 = vmul.f32 %v57, 3.0
  %v59 = vadd.f32 %v51, %v58
  %vm60 = vcmask 7168
  %61 = vst.msk [vmem:[%s4] sm:$0xff] %vm60, %v59
  // Predicated region
  $region14: #{_elr_forward.1} parent=0 // pred_check
    _
  $region15: #{_elr_forward.1} parent=0 // pred_check_branch
    %63 = sbr.rel (0) target = $region17
  $region16: #{_elr_forward.1} parent=0 // pred_region
    _
  $region17: #{_elr_forward.1} parent=0 // pred_fallthru
    _
  // Predicated region
  $region18: #{_elr_forward.1} parent=0 // pred_check
    _
  $region19: #{_elr_forward.1} parent=0 // pred_check_branch
    %65 = sbr.rel (0) target = $region21
  $region20: #{_elr_forward.1} parent=0 // pred_region
    _
  $region21: #{_elr_forward.1} parent=0 // pred_fallthru
    _
  // Predicated region
  $region22: #{_elr_forward.1} parent=0 // pred_check
    _
  $region23: #{_elr_forward.1} parent=0 // pred_check_branch
    %67 = sbr.rel (0) target = $region25
  $region24: #{_elr_forward.1} parent=0 // pred_region
    _
  $region25: #{_elr_forward.1} parent=0 // pred_fallthru
    _
  // Predicated region
  $region26: #{_elr_forward.1} parent=0 // pred_check
    _
  $region27: #{_elr_forward.1} parent=0 // pred_check_branch
    %69 = sbr.rel (0) target = $region29
  $region28: #{_elr_forward.1} parent=0 // pred_region
    _
  $region29: #{_elr_forward.1} parent=0 // pred_fallthru
    _

</llo_original>
